<compile_context>
chip_gen: v5e
topology: v5e:2x2
jax: 0.10.0
libtpu: 0.0.40
codegen_flags: <defaults>
</compile_context>

<pallas_src>
import jax
import jax.numpy as jnp
from jax import lax
from jax.experimental import pallas as pl
from jax.experimental.pallas import tpu as pltpu

K = 3          # conv kernel size
PAD = 1        # reflect padding on each side of H and W
STRIDE = 2     # conv stride
EPS = 1e-5     # nn.InstanceNorm2d default eps


def _contracting_block_kernel(p_ref, w_ref, b_ref, o_ref):
    """One batch element per grid step.

    p_ref : (1, K*K*Cin, HW)   im2col patches, spatial (HW) in lanes (VMEM)
    w_ref : (Cout, K*K*Cin)    conv weights, contraction in lanes (VMEM)
    b_ref : (Cout, 1)          bias (VMEM)
    o_ref : (1, Cout, HW)      output, spatial (HW) in lanes (VMEM)
    """
    # Entire convolution = one MXU matmul with contraction depth K*K*Cin.
    y = jnp.dot(w_ref[...], p_ref[0],
                preferred_element_type=jnp.float32)          # (Cout, HW) f32
    y = y + b_ref[...]                                       # bias, lane-bcast

    # InstanceNorm2d: per-channel (sublane row) stats over spatial (lanes),
    # biased variance, no affine params.
    hw = y.shape[1]
    mean = jnp.sum(y, axis=1, keepdims=True) * (1.0 / hw)
    yc = y - mean
    var = jnp.sum(yc * yc, axis=1, keepdims=True) * (1.0 / hw)
    y = yc * lax.rsqrt(var + EPS)

    # ReLU.
    y = jnp.maximum(y, 0.0)

    # Single lane-dense store of the whole tile.
    o_ref[...] = y[None, :, :].astype(o_ref.dtype)


def contracting_block(x_nchw, weight_oihw, bias):
    """Forward pass of ContractingBlock (use_bn=True, activation='relu').

    x_nchw      : (N, Cin, H, W)
    weight_oihw : (2*Cin, Cin, 3, 3)   (PyTorch Conv2d weight layout)
    bias        : (2*Cin,)
    returns     : (N, 2*Cin, H_out, W_out)  with H_out = (H-1)//2 + 1
    """
    N, Cin, H, W = x_nchw.shape
    Cout = weight_oihw.shape[0]
    Hout = (H + 2 * PAD - K) // STRIDE + 1
    Wout = (W + 2 * PAD - K) // STRIDE + 1
    HW = Hout * Wout

    # Glue (plain JAX): reflect padding + strided im2col gather. These are
    # cheap data movement with no clean BlockSpec expression; the kernel then
    # sees lane-dense, MXU-friendly operands.
    x_pad = jnp.pad(x_nchw, ((0, 0), (0, 0), (PAD, PAD), (PAD, PAD)),
                    mode="reflect")                          # (N, Cin, H+2, W+2)
    taps = []
    for kh in range(K):
        for kw in range(K):
            taps.append(x_pad[:, :,
                              kh:kh + STRIDE * Hout:STRIDE,
                              kw:kw + STRIDE * Wout:STRIDE])  # (N, Cin, Hout, Wout)
    # Contraction index order = (kh, kw, cin); spatial flattened into lanes.
    patches = jnp.stack(taps, axis=1).reshape(N, K * K * Cin, HW)

    # Weight (Cout, Cin, K, K) -> (Cout, K, K, Cin) -> (Cout, K*K*Cin) to match
    # the (kh, kw, cin) contraction order above.
    w2d = jnp.transpose(weight_oihw, (0, 2, 3, 1)).reshape(Cout, K * K * Cin)
    b2d = bias.reshape(Cout, 1)

    # Tile-derived VMEM budget (double-buffered in/out + resident weights),
    # kept well under the v7x 64 MiB physical limit.
    itemsize = jnp.dtype(x_nchw.dtype).itemsize
    tile_bytes = (2 * (K * K * Cin) * HW * itemsize          # patches, 2 bufs
                  + 2 * Cout * HW * itemsize                 # output, 2 bufs
                  + Cout * (K * K * Cin + 1) * itemsize)     # weights + bias
    vmem_limit = int(min(max(2 * tile_bytes + (4 << 20), 16 << 20), 48 << 20))

    # TODO(synk): for very large spatial sizes on v7x, add an HW-tile grid axis
    # with a two-pass structure (conv+stats accumulate, then normalize), since
    # InstanceNorm needs full-spatial statistics per channel.
    out = pl.pallas_call(
        _contracting_block_kernel,
        out_shape=jax.ShapeDtypeStruct((N, Cout, HW), x_nchw.dtype),
        grid=(N,),
        in_specs=[
            pl.BlockSpec((1, K * K * Cin, HW), lambda n: (n, 0, 0)),
            pl.BlockSpec((Cout, K * K * Cin), lambda n: (0, 0)),
            pl.BlockSpec((Cout, 1), lambda n: (0, 0)),
        ],
        out_specs=pl.BlockSpec((1, Cout, HW), lambda n: (n, 0, 0)),
        compiler_params=pltpu.CompilerParams(
            dimension_semantics=("parallel",),
            vmem_limit_bytes=vmem_limit),
    )(patches, w2d, b2d)

    return out.reshape(N, Cout, Hout, Wout)


if __name__ == "__main__":
    # Small shapes consistent with the module: batch=2, in_ch=4 -> out_ch=8, 16x16.
    N, CIN, H, W = 2, 4, 16, 16
    COUT = 2 * CIN

    key = jax.random.PRNGKey(0)
    kx, kw, kb = jax.random.split(key, 3)

    x = jax.random.normal(kx, (N, CIN, H, W), dtype=jnp.float32)
    # Deterministic init mimicking nn.Conv2d default (uniform +/- 1/sqrt(fan_in)).
    fan_in = CIN * K * K
    bound = 1.0 / (fan_in ** 0.5)
    weight = jax.random.uniform(kw, (COUT, CIN, K, K), jnp.float32,
                                minval=-bound, maxval=bound)
    bias = jax.random.uniform(kb, (COUT,), jnp.float32,
                              minval=-bound, maxval=bound)

    out = jax.block_until_ready(contracting_block(x, weight, bias))
    assert out.shape == (N, COUT, H // 2, W // 2)

    # Reference: XLA strided conv on the reflect-padded input + instance norm + ReLU.
    x_pad_ref = jnp.pad(x, ((0, 0), (0, 0), (PAD, PAD), (PAD, PAD)),
                        mode="reflect")
    conv = lax.conv_general_dilated(
        x_pad_ref, weight, window_strides=(STRIDE, STRIDE), padding="VALID",
        dimension_numbers=("NCHW", "OIHW", "NCHW"),
        precision=lax.Precision.HIGHEST) + bias[None, :, None, None]
    mean = conv.mean(axis=(2, 3), keepdims=True)
    var = ((conv - mean) ** 2).mean(axis=(2, 3), keepdims=True)
    ref = jnp.maximum((conv - mean) / jnp.sqrt(var + EPS), 0.0)

    assert jnp.allclose(out, ref, rtol=1e-3, atol=1e-3), (
        float(jnp.max(jnp.abs(out - ref))))

    print("KERNEL_OK")
</pallas_src>

<mosaic_0001>
module attributes {stable_mosaic.version = 11 : i64} {
  func.func @_contracting_block_kernel(%arg0: i32, %arg1: memref<1x36x64xf32, #tpu.memory_space<vmem>>, %arg2: memref<8x36xf32, #tpu.memory_space<vmem>>, %arg3: memref<8x1xf32, #tpu.memory_space<vmem>>, %arg4: memref<1x8x64xf32, #tpu.memory_space<vmem>>) attributes {dimension_semantics = [#tpu.dimension_semantics<parallel>], iteration_bounds = array<i64: 2>, scalar_prefetch = 0 : i64, scratch_operands = 0 : i64, tpu.core_type = #tpu.core_type<tc>, window_params = [{transform_indices = @transform_0, window_bounds = array<i64: 1, 36, 64>}, {pipeline_mode = #tpu.pipeline_mode<synchronous>, transform_indices = @transform_1, window_bounds = array<i64: 8, 36>}, {pipeline_mode = #tpu.pipeline_mode<synchronous>, transform_indices = @transform_2, window_bounds = array<i64: 8, 1>}, {transform_indices = @transform_3, window_bounds = array<i64: 1, 8, 64>}]} {
    %c0 = arith.constant 0 : index
    %c0_0 = arith.constant 0 : index
    %0 = vector.load %arg2[%c0, %c0_0] : memref<8x36xf32, #tpu.memory_space<vmem>>, vector<8x36xf32>
    %c0_1 = arith.constant 0 : index
    %c0_2 = arith.constant 0 : index
    %c0_3 = arith.constant 0 : index
    %1 = vector.load %arg1[%c0_1, %c0_2, %c0_3] : memref<1x36x64xf32, #tpu.memory_space<vmem>>, vector<1x36x64xf32>
    %2 = vector.shape_cast %1 : vector<1x36x64xf32> to vector<36x64xf32>
    %cst = arith.constant dense<0.000000e+00> : vector<8x64xf32>
    %3 = tpu.matmul %0, %2, %cst {dimension_numbers = #tpu.dot_dimension_numbers<[1], [0], [0], [1], [0, 0, 1, 1], [], []>} : vector<8x36xf32>, vector<36x64xf32>, vector<8x64xf32> -> vector<8x64xf32>
    %c0_4 = arith.constant 0 : index
    %c0_5 = arith.constant 0 : index
    %4 = vector.load %arg3[%c0_4, %c0_5] : memref<8x1xf32, #tpu.memory_space<vmem>>, vector<8x1xf32>
    %5 = vector.broadcast %4 : vector<8x1xf32> to vector<8x64xf32>
    %6 = arith.addf %3, %5 : vector<8x64xf32>
    %cst_6 = arith.constant dense<0.000000e+00> : vector<8xf32>
    %7 = vector.multi_reduction <add>, %6, %cst_6 [1] : vector<8x64xf32> to vector<8xf32>
    %8 = vector.shape_cast %7 : vector<8xf32> to vector<8x1xf32>
    %cst_7 = arith.constant 1.562500e-02 : f32
    %9 = vector.broadcast %cst_7 : f32 to vector<8x1xf32>
    %10 = arith.mulf %8, %9 : vector<8x1xf32>
    %11 = vector.broadcast %10 : vector<8x1xf32> to vector<8x64xf32>
    %12 = arith.subf %6, %11 : vector<8x64xf32>
    %13 = arith.mulf %12, %12 : vector<8x64xf32>
    %cst_8 = arith.constant dense<0.000000e+00> : vector<8xf32>
    %14 = vector.multi_reduction <add>, %13, %cst_8 [1] : vector<8x64xf32> to vector<8xf32>
    %15 = vector.shape_cast %14 : vector<8xf32> to vector<8x1xf32>
    %cst_9 = arith.constant 1.562500e-02 : f32
    %16 = vector.broadcast %cst_9 : f32 to vector<8x1xf32>
    %17 = arith.mulf %15, %16 : vector<8x1xf32>
    %cst_10 = arith.constant 9.99999974E-6 : f32
    %18 = vector.broadcast %cst_10 : f32 to vector<8x1xf32>
    %19 = arith.addf %17, %18 : vector<8x1xf32>
    %20 = math.rsqrt %19 : vector<8x1xf32>
    %21 = vector.broadcast %20 : vector<8x1xf32> to vector<8x64xf32>
    %22 = arith.mulf %12, %21 : vector<8x64xf32>
    %cst_11 = arith.constant 0.000000e+00 : f32
    %23 = vector.broadcast %cst_11 : f32 to vector<8x64xf32>
    %24 = arith.maximumf %22, %23 : vector<8x64xf32>
    %25 = vector.shape_cast %24 : vector<8x64xf32> to vector<1x8x64xf32>
    %c0_12 = arith.constant 0 : index
    %c0_13 = arith.constant 0 : index
    %c0_14 = arith.constant 0 : index
    %26 = vector.load %arg4[%c0_12, %c0_13, %c0_14] : memref<1x8x64xf32, #tpu.memory_space<vmem>>, vector<1x8x64xf32>
    tpu.vector_store %arg4[%c0_12, %c0_13, %c0_14], %25 {strides = array<i32>} : memref<1x8x64xf32, #tpu.memory_space<vmem>>, vector<1x8x64xf32>,
    return
  }
  func.func @transform_0(%arg0: i32) -> (i32, i32, i32) {
    %c0_i32 = arith.constant 0 : i32
    %c0_i32_0 = arith.constant 0 : i32
    %c0_i32_1 = arith.constant 0 : i32
    return %arg0, %c0_i32, %c0_i32_0 : i32, i32, i32
  }
  func.func @transform_1(%arg0: i32) -> (i32, i32) {
    %c0_i32 = arith.constant 0 : i32
    %c0_i32_0 = arith.constant 0 : i32
    %c0_i32_1 = arith.constant 0 : i32
    return %c0_i32, %c0_i32_0 : i32, i32
  }
  func.func @transform_2(%arg0: i32) -> (i32, i32) {
    %c0_i32 = arith.constant 0 : i32
    %c0_i32_0 = arith.constant 0 : i32
    %c0_i32_1 = arith.constant 0 : i32
    return %c0_i32, %c0_i32_0 : i32, i32
  }
  func.func @transform_3(%arg0: i32) -> (i32, i32, i32) {
    %c0_i32 = arith.constant 0 : i32
    %c0_i32_0 = arith.constant 0 : i32
    %c0_i32_1 = arith.constant 0 : i32
    return %arg0, %c0_i32, %c0_i32_0 : i32, i32, i32
  }
}

</mosaic_0001>

<llo_original>
// kernel: tpu_custom_call.1
$region0: #{tpu_custom_call.1}
  #allocation0 [shape = 'u32[]', space=smem, size = 0x4, offset = 0x4, fixed_abs, tag = 'smem constant byte address 0x4 - core index']
  #allocation1 [shape = 'u32[72,128]{1,0:T(1,128)}', space=vmem, size = 0x9000, scoped, tag = 'internal scratch']
  %s0 = inlined_call_operand.vmem [shape: f32[2,36,64], index: 0, kind: input, shape index: {}]
  %s1 = inlined_call_operand.vmem [shape: f32[8,36], index: 1, kind: input, shape index: {}]
  %s2 = inlined_call_operand.vmem [shape: f32[8,1], index: 2, kind: input, shape index: {}]
  %s3 = inlined_call_operand.hbm [shape: f32[2,8,64], index: 3, kind: output, shape index: {}]
  %s4 = sld [smem:[#allocation0]]
  $region45: #{tpu_custom_call.1} parent=0
    _
  %s6 = ssub.s32 1, %s4
  %s7 = scalar_select 0, %s6, %s4
  $region1: #{tpu_custom_call.1} parent=0
    #allocation2 [shape = 'u8[8192]{0}', space=vmem, size = 0x2000, scoped, tag = 'output window, operand 0']
    #allocation3 [shape = 's32[2]{0}', space=sflag, size = 0x8, scoped, tag = 'scoped memory for tpu_custom_call.1']
    %8 = vsyncpa [#allocation3], 0
    %s9 = scalar_lea.sflag [#allocation3], 1
    %10 = vsyncpa %s9, 0
    loop: start=0, step=1, limit=4
    $region2: #{tpu_custom_call.1} parent=1 // loop_pre_header
      _
    $region3: #{tpu_custom_call.1} parent=1 // loop_header
      %s12 = sphi 0, %s16
      %p13 = scmp.ge.s32.totalorder %s12, 4
      %s22 = sphi 0, %s24
      %s25 = sphi 0, %s22
      %s26 = sphi 0, %s25
      %s42 = sphi 0, %s26
      %s46 = sphi 0, %s46
      %s48 = sphi 0, %s46
      %s49 = sphi 0, %s48
      %s63 = sphi 0, %s49
      %s67 = sphi 0, %s67
      %s69 = sphi 0, %s67
      %s70 = sphi 0, %s69
      %s84 = sphi 0, %s70
      %s90 = sphi 0, %s92
      %s93 = sphi 0, %s90
      %s94 = sphi 0, %s93
      %s110 = sphi 0, %s94
    $region4: #{tpu_custom_call.1} parent=1 // loop_header_branch
      %15 = sbr.rel (%p13) target = $region8
    $region5: #{tpu_custom_call.1} parent=1 // loop_body
      %s17 = ssub.s32 %s12, 1
      %s18 = ssub.s32 %s12, 2
      %s19 = sadd.s32 %s12, 1
      %s20 = ssub.s32 %s12, %s19
      %p21 = scmp.eq.s32.totalorder %s20, 0
      %s23 = sadd.s32 %s22, 1
      %s24 = scalar_select %p21, %s22, %s23
      %p27 = pneg %p21
      %p28 = scmp.eq.s32.totalorder %s12, 1
      %p29 = por %p27, %p28
      %p30 = scmp.ne.s32.totalorder %s22, %s25
      %p31 = scmp.eq.s32.totalorder %s12, 0
      %p32 = por %p30, %p31
      %p33 = scmp.ne.s32.totalorder %s22, %s25
      %p34 = scmp.eq.s32.totalorder %s17, 1
      %p35 = por %p33, %p34
      %p36 = scmp.ne.s32.totalorder %s25, %s26
      %p37 = scmp.eq.s32.totalorder %s17, 0
      %p38 = por %p36, %p37
      %p39 = scmp.ne.s32.totalorder %s25, %s26
      %p40 = scmp.eq.s32.totalorder %s18, 1
      %p41 = por %p39, %p40
      %p43 = scmp.ne.s32.totalorder %s26, %s42
      %p44 = scmp.eq.s32.totalorder %s18, 0
      %p45 = por %p43, %p44
      %s47 = sadd.s32 %s46, 1
      %p50 = scmp.eq.s32.totalorder %s12, 1
      %p51 = scmp.ne.s32.totalorder %s46, %s48
      %p52 = scmp.eq.s32.totalorder %s12, 0
      %p53 = por %p51, %p52
      %p54 = scmp.ne.s32.totalorder %s46, %s48
      %p55 = scmp.eq.s32.totalorder %s17, 1
      %p56 = por %p54, %p55
      %p57 = scmp.ne.s32.totalorder %s48, %s49
      %p58 = scmp.eq.s32.totalorder %s17, 0
      %p59 = por %p57, %p58
      %p60 = scmp.ne.s32.totalorder %s48, %s49
      %p61 = scmp.eq.s32.totalorder %s18, 1
      %p62 = por %p60, %p61
      %p64 = scmp.ne.s32.totalorder %s49, %s63
      %p65 = scmp.eq.s32.totalorder %s18, 0
      %p66 = por %p64, %p65
      %s68 = sadd.s32 %s67, 1
      %p71 = scmp.eq.s32.totalorder %s12, 1
      %p72 = scmp.ne.s32.totalorder %s67, %s69
      %p73 = scmp.eq.s32.totalorder %s12, 0
      %p74 = por %p72, %p73
      %p75 = scmp.ne.s32.totalorder %s67, %s69
      %p76 = scmp.eq.s32.totalorder %s17, 1
      %p77 = por %p75, %p76
      %p78 = scmp.ne.s32.totalorder %s69, %s70
      %p79 = scmp.eq.s32.totalorder %s17, 0
      %p80 = por %p78, %p79
      %p81 = scmp.ne.s32.totalorder %s69, %s70
      %p82 = scmp.eq.s32.totalorder %s18, 1
      %p83 = por %p81, %p82
      %p85 = scmp.ne.s32.totalorder %s70, %s84
      %p86 = scmp.eq.s32.totalorder %s18, 0
      %p87 = por %p85, %p86
      %s88 = ssub.s32 %s12, %s19
      %p89 = scmp.eq.s32.totalorder %s88, 0
      %s91 = sadd.s32 %s90, 1
      %s92 = scalar_select %p89, %s90, %s91
      %p95 = pneg %p89
      %p96 = scmp.eq.s32.totalorder %s12, 1
      %p97 = por %p95, %p96
      %p98 = scmp.ne.s32.totalorder %s90, %s93
      %p99 = scmp.eq.s32.totalorder %s12, 0
      %p100 = por %p98, %p99
      %p101 = scmp.ne.s32.totalorder %s90, %s93
      %p102 = scmp.eq.s32.totalorder %s17, 1
      %p103 = por %p101, %p102
      %p104 = scmp.ne.s32.totalorder %s93, %s94
      %p105 = scmp.eq.s32.totalorder %s17, 0
      %p106 = por %p104, %p105
      %p107 = scmp.ne.s32.totalorder %s93, %s94
      %p108 = scmp.eq.s32.totalorder %s18, 1
      %p109 = por %p107, %p108
      %p111 = scmp.ne.s32.totalorder %s94, %s110
      %p112 = scmp.eq.s32.totalorder %s18, 0
      %p113 = por %p111, %p112
      %p114 = scmp.le.s32.totalorder 1, %s12
      %p115 = scmp.lt.s32.totalorder %s12, 3
      %p116 = pnand %p114, %p115
      %p117 = pneg %p116
      // Predicated region
      $region9: #{tpu_custom_call.1} parent=5 // pred_check
        _
      $region10: #{tpu_custom_call.1} parent=5 // pred_check_branch
        %119 = sbr.rel (%p116) target = $region12
      $region11: #{tpu_custom_call.1} parent=5 // pred_region
        %s120 = ssub.s32 %s12, 1
        // Predicated region
        $region13: #{tpu_custom_call.1} parent=11 // pred_check
          %p121 = pneg %p59
        $region14: #{tpu_custom_call.1} parent=11 // pred_check_branch
          %123 = sbr.rel (%p121) target = $region16
        $region15: #{tpu_custom_call.1} parent=11 // pred_region
          _
        $region16: #{tpu_custom_call.1} parent=11 // pred_fallthru
          _
        // Predicated region
        $region17: #{tpu_custom_call.1} parent=11 // pred_check
          %p124 = pneg %p80
        $region18: #{tpu_custom_call.1} parent=11 // pred_check_branch
          %126 = sbr.rel (%p124) target = $region20
        $region19: #{tpu_custom_call.1} parent=11 // pred_region
          _
        $region20: #{tpu_custom_call.1} parent=11 // pred_fallthru
          _
      $region12: #{tpu_custom_call.1} parent=5 // pred_fallthru
        _
      %p127 = scmp.lt.s32.totalorder %s12, 2
      // Predicated region
      $region21: #{tpu_custom_call.1} parent=5 // pred_check
        %p128 = pneg %p127
      $region22: #{tpu_custom_call.1} parent=5 // pred_check_branch
        %130 = sbr.rel (%p128) target = $region24
      $region23: #{tpu_custom_call.1} parent=5 // pred_region
        // Predicated region
        $region25: #{tpu_custom_call.1} parent=23 // pred_check
          %p131 = pneg %p32
        $region26: #{tpu_custom_call.1} parent=23 // pred_check_branch
          %133 = sbr.rel (%p131) target = $region28
        $region27: #{tpu_custom_call.1} parent=23 // pred_region
          %p134 = scmp.lt.s32.totalorder %s12, 1
          %s135 = scalar_select %p134, %s12, 1
          %s136 = smul.addr %s135, 5
          %s137 = smul.addr %s136, 8
          %s138 = scalar_lea.vmem %s0, %s137
        $region28: #{tpu_custom_call.1} parent=23 // pred_fallthru
          _
      $region24: #{tpu_custom_call.1} parent=5 // pred_fallthru
        _
      %p139 = scmp.le.s32.totalorder 1, %s12
      %p140 = scmp.lt.s32.totalorder %s12, 3
      %p141 = pnand %p139, %p140
      %p142 = pneg %p141
      // Predicated region
      $region29: #{tpu_custom_call.1} parent=5 // pred_check
        _
      $region30: #{tpu_custom_call.1} parent=5 // pred_check_branch
        %144 = sbr.rel (%p141) target = $region32
      $region31: #{tpu_custom_call.1} parent=5 // pred_region
        %s145 = ssub.s32 %s12, 1
        %p146 = scmp.lt.s32.totalorder %s17, 1
        %s147 = scalar_select %p146, %s17, 1
        %s148 = smul.addr %s147, 5
        %s149 = smul.addr %s148, 8
        %s150 = scalar_lea.vmem %s0, %s149
        %p151 = pneg %p38
        %p152 = pneg %p35
        %p153 = pneg %p59
        %p154 = pneg %p56
        %p155 = pneg %p80
        %p156 = pneg %p77
        %p157 = pneg %p106
        %p158 = pneg %p103
        %s159 = sand.u32 %s93, 1
        %s160 = scalar_lea.sflag [#allocation3], %s159
        %s161 = sand.u32 %s93, 1
        %s162 = smul.addr %s161, 8
        %s163 = scalar_lea.vmem [#allocation2], %s162
        %p164 = scmp.lt.s32.totalorder %s17, 1
        %s165 = scalar_select %p164, %s17, 1
        %s166 = smul.addr %s165, 5
        %s167 = smul.addr %s166, 8
        %s168 = scalar_lea.vmem %s0, %s167
        %v169 = vld [vmem:[%s1] sm:$0xff]
        %v170 = vld [vmem:[%s168] sm:$0xff]
        %v171 = vld [vmem:[%s168 + $0x8] sm:$0xff]
        %v172 = vld [vmem:[%s168 + $0x10] sm:$0xff]
        %v173 = vld [vmem:[%s168 + $0x18] sm:$0xff]
        %v174 = vld [vmem:[%s168 + $0x20] sm:$0xf]
        %v175 = vld [vmem:[%s2] sm:$0xff]
        %177 = vset.pattern.permute.xlu0 0
        %178 = vperm.xlu0 %177, %v175
        %v179 = vpop.permute.xlu0 %178
        %vm181 = vcmask 293888
        %v183 = vsel %vm181, %v169, 0
        %vm185 = vcmask 1043456
        %v187 = vsel %vm185, %v174, 0
        %189 = vmatpush.msra.mxu0 0.0
        %190 = vmatpush.msra.mxu0 0.0
        %191 = vmatpush.msra.mxu0 0.0
        %192 = vmatpush.msra.mxu0 0.0
        %193 = vmatpush.msra.mxu0 0.0
        %194 = vmatpush.msra.mxu0 0.0
        %195 = vmatpush.msra.mxu0 0.0
        %196 = vmatpush.msra.mxu0 0.0
        %197 = vmatpush.msra.mxu0 0.0
        %198 = vmatpush.msra.mxu0 0.0
        %199 = vmatpush.msra.mxu0 0.0
        %200 = vmatpush.msra.mxu0 %v187
        %201 = vmatpush.msra.mxu0 %v173
        %202 = vmatpush.msra.mxu0 %v172
        %203 = vmatpush.msra.mxu0 %v171
        %204 = vmatpush.msra.mxu0 %v170
        %205 = vmatmul.f32.gmra.mxu0 %v183
        %v206 = vpop.f32.mrf.mxu0
        %v207 = vadd.f32 %v179, %v206
        %208 = vdwg.mxu0
        %vm209 = vcmask 523264
        %v210 = vsel %vm209, %v207, 0.0
        %211 = vadd.xlane.f32.xlu0 %v210
        %v212 = vpop.xlane.xlu0 %211
        %v213 = vmul.f32 %v212, 0.015625
        %v214 = vsub.f32 %v207, %v213
        %v215 = vmul.f32 %v214, %v214
        %v216 = vsel %vm209, %v215, 0.0
        %217 = vadd.xlane.f32.xlu0 %v216
        %v218 = vpop.xlane.xlu0 %217
        %v219 = vmul.f32 %v218, 0.015625
        %v220 = vadd.f32 %v219, 1e-05
        %v221 = vrsqrt.pop %v220
        %v222 = vmul.f32 %v221, %v220
        %v223 = vmul.f32 %v222, %v221
        %v224 = vmul.f32 0.5, %v223
        %v225 = vsub.f32 1.5, %v224
        %v226 = vmul.f32 %v221, %v225
        %vm227 = vweird.f32 %v220
        %vm228 = vweird.f32 %v221
        %vm229 = vmor %vm227, %vm228
        %v230 = vsel %vm229, %v221, %v226
        %v231 = vmul.f32 %v214, %v230
        %v232 = vmax.f32 %v231, 0.0
        %233 = vst.msk [vmem:[%s163] sm:$0xff] %vm209, %v232
        %s234 = sand.u32 %s93, 1
        %s235 = scalar_lea.sflag [#allocation3], %s234
        %s236 = sand.u32 %s93, 1
        %s237 = smul.addr %s236, 8
        %s238 = scalar_lea.vmem [#allocation2], %s237
        // Predicated region
        $region33: #{tpu_custom_call.1} parent=31 // pred_check
          %p239 = pneg %p103
        $region34: #{tpu_custom_call.1} parent=31 // pred_check_branch
          %241 = sbr.rel (%p239) target = $region36
        $region35: #{tpu_custom_call.1} parent=31 // pred_region
          %243 = vsyncadd %s235, 0
          %s244 = smul.addr %s17, 8
          %s245 = scalar_lea.hbm %s3, %s244
          %s247 = sshll.u32 %s238, 4
          %s248 = int_to_ptr.vmem [resolvable:$true] %s247
          %s249 = sshll.u32 %s245, 4
          %s250 = int_to_ptr.hbm [resolvable:$true] %s249
          %252 = dma.vmem_to_hbm [thread:$0]  %s248, 128, %s250, %s235
        $region36: #{tpu_custom_call.1} parent=31 // pred_fallthru
          _
      $region32: #{tpu_custom_call.1} parent=5 // pred_fallthru
        _
      %p253 = scmp.le.s32.totalorder 2, %s12
      // Predicated region
      $region37: #{tpu_custom_call.1} parent=5 // pred_check
        %p254 = pneg %p253
      $region38: #{tpu_custom_call.1} parent=5 // pred_check_branch
        %256 = sbr.rel (%p254) target = $region40
      $region39: #{tpu_custom_call.1} parent=5 // pred_region
        %s257 = ssub.s32 %s12, 2
        // Predicated region
        $region41: #{tpu_custom_call.1} parent=39 // pred_check
          %p258 = pneg %p109
        $region42: #{tpu_custom_call.1} parent=39 // pred_check_branch
          %260 = sbr.rel (%p258) target = $region44
        $region43: #{tpu_custom_call.1} parent=39 // pred_region
          %s261 = sand.u32 %s94, 1
          %s262 = scalar_lea.sflag [#allocation3], %s261
          %s263 = sand.u32 %s94, 1
          %s264 = smul.addr %s263, 8
          %s265 = scalar_lea.vmem [#allocation2], %s264
          %267 = dma.done %s262, 128
        $region44: #{tpu_custom_call.1} parent=39 // pred_fallthru
          _
      $region40: #{tpu_custom_call.1} parent=5 // pred_fallthru
        _
    $region6: #{tpu_custom_call.1} parent=1 // loop_footer
      %s16 = sadd.s32 1, %s12
    $region7: #{tpu_custom_call.1} parent=1 // loop_footer_branch
      %11 = sbr.rel target = $region3
    $region8: #{tpu_custom_call.1} parent=1 // loop_exit
      _
    %268 = vsyncpa [#allocation3], 1
    %s269 = scalar_lea.sflag [#allocation3], 1
    %270 = vsyncpa %s269, 1

</llo_original>
